<compile_context>
chip_gen: v7x
topology: tpu7x:2x2x1
jax: 0.10.0
libtpu: 0.0.40
codegen_flags: <defaults>
</compile_context>

<pallas_src>
import functools
import math

import jax
import jax.numpy as jnp
from jax import lax
from jax.experimental import pallas as pl
from jax.experimental.pallas import tpu as pltpu

BF16 = jnp.bfloat16
NEG_INF = -1e30


# ------------------------- per-generation tuning ----------------------------

def _tpu_generation():
    try:
        kind = jax.devices()[0].device_kind.lower()
    except Exception:
        return 6
    for g in (7, 6, 5):
        if "v%d" % g in kind:
            return g
    return 6


_GEN = _tpu_generation()
if _GEN >= 7:      # v7x: 64 MiB VMEM per core, 2 TensorCores per chip
    _VMEM_LIMIT = 48 * 1024 * 1024
    _TM_CAP, _TN_CAP, _TK_CAP = 256, 256, 512
    _NUM_TC = 2
else:              # v5e / v6e: 128 MiB VMEM, 1 TensorCore
    _VMEM_LIMIT = 96 * 1024 * 1024
    _TM_CAP, _TN_CAP, _TK_CAP = 512, 512, 1024
    _NUM_TC = 1


def _cparams(*sem):
    return pltpu.CompilerParams(dimension_semantics=sem,
                                vmem_limit_bytes=_VMEM_LIMIT)


def _pick_tile(dim, target, align):
    """Largest divisor of `dim` that is <= target and a multiple of `align`;
    falls back to the full dim (a full-extent block is always legal)."""
    if dim <= target:
        return dim
    t = (min(target, dim) // align) * align
    while t >= align:
        if dim % t == 0:
            return t
        t -= align
    return dim


def _pick_m_tile(m):
    """Row tile.  Only halve M on multi-TensorCore chips (v7x); on v5e/v6e a
    bigger tile just increases weight reuse per pass."""
    if m <= 16:
        return m
    if _NUM_TC > 1:
        target = min(_TM_CAP, max(16, (m // _NUM_TC) // 16 * 16))
    else:
        target = _TM_CAP
    return _pick_tile(m, target, 16)


# --------------------- fused RMSNorm + matmul (QKV proj) --------------------

def _rmsnorm_matmul_kernel(x_ref, g_ref, w_ref, o_ref, *, eps):
    x = x_ref[...].astype(jnp.float32)                       # (tm, D)
    var = jnp.mean(x * x, axis=-1, keepdims=True)
    xn = x * jax.lax.rsqrt(var + eps) * g_ref[...]           # f32 norm math
    o_ref[...] = jnp.dot(xn.astype(BF16), w_ref[...],
                         preferred_element_type=jnp.float32).astype(o_ref.dtype)


def rmsnorm_matmul(x2d, gamma, w, eps, out_dtype=BF16):
    m, d = x2d.shape
    _, n = w.shape
    tm = _pick_m_tile(m)
    tn = _pick_tile(n, _TN_CAP, 128)
    # Grid order (i outer, j inner): the f32 activation row-block is read once per i
    # and the (smaller) bf16 weight blocks are the ones re-streamed.
    return pl.pallas_call(
        functools.partial(_rmsnorm_matmul_kernel, eps=eps),
        grid=(m // tm, n // tn),
        in_specs=[pl.BlockSpec((tm, d), lambda i, j: (i, 0)),
                  pl.BlockSpec((1, d), lambda i, j: (0, 0)),
                  pl.BlockSpec((d, tn), lambda i, j: (0, j))],
        out_specs=pl.BlockSpec((tm, tn), lambda i, j: (i, j)),
        out_shape=jax.ShapeDtypeStruct((m, n), out_dtype),
        compiler_params=_cparams("parallel", "parallel"),
    )(x2d, gamma.reshape(1, d), w)


# -------------------- K-tiled matmul with fused residual --------------------

def _matmul_residual_kernel(a_ref, b_ref, r_ref, o_ref, acc_ref):
    k = pl.program_id(2)

    @pl.when(k == 0)
    def _():
        acc_ref[...] = jnp.zeros_like(acc_ref)

    acc_ref[...] += jnp.dot(a_ref[...], b_ref[...],
                            preferred_element_type=jnp.float32)

    @pl.when(k == pl.num_programs(2) - 1)
    def _():
        o_ref[...] = (acc_ref[...] + r_ref[...].astype(jnp.float32)
                      ).astype(o_ref.dtype)


def matmul_residual(a, w, residual, out_dtype=jnp.float32):
    m, kk = a.shape
    _, n = w.shape
    tm = _pick_m_tile(m)
    tn = _pick_tile(n, _TN_CAP, 128)
    tk = _pick_tile(kk, _TK_CAP, 128)
    return pl.pallas_call(
        _matmul_residual_kernel,
        grid=(m // tm, n // tn, kk // tk),
        in_specs=[pl.BlockSpec((tm, tk), lambda i, j, k: (i, k)),
                  pl.BlockSpec((tk, tn), lambda i, j, k: (k, j)),
                  pl.BlockSpec((tm, tn), lambda i, j, k: (i, j))],
        out_specs=pl.BlockSpec((tm, tn), lambda i, j, k: (i, j)),
        out_shape=jax.ShapeDtypeStruct((m, n), out_dtype),
        scratch_shapes=[pltpu.VMEM((tm, tn), jnp.float32)],
        compiler_params=_cparams("parallel", "parallel", "arbitrary"),
    )(a, w, residual)


# ------------------- fused RMSNorm + SwiGLU (w1/w3 + gate) ------------------

def _rmsnorm_swiglu_kernel(x_ref, g_ref, w1_ref, w3_ref, o_ref, *, eps):
    x = x_ref[...].astype(jnp.float32)
    var = jnp.mean(x * x, axis=-1, keepdims=True)
    xn = (x * jax.lax.rsqrt(var + eps) * g_ref[...]).astype(BF16)
    gate = jnp.dot(xn, w1_ref[...], preferred_element_type=jnp.float32)
    up = jnp.dot(xn, w3_ref[...], preferred_element_type=jnp.float32)
    o_ref[...] = (gate * jax.nn.sigmoid(gate) * up).astype(o_ref.dtype)  # silu in f32


def rmsnorm_swiglu(x2d, gamma, w1, w3, eps, out_dtype=BF16):
    m, d = x2d.shape
    _, f = w1.shape
    tm = _pick_m_tile(m)
    # keep tf at 256: two f32 (tm, tf) intermediates live at once in this kernel
    tf = _pick_tile(f, 256, 128)
    return pl.pallas_call(
        functools.partial(_rmsnorm_swiglu_kernel, eps=eps),
        grid=(m // tm, f // tf),
        in_specs=[pl.BlockSpec((tm, d), lambda i, j: (i, 0)),
                  pl.BlockSpec((1, d), lambda i, j: (0, 0)),
                  pl.BlockSpec((d, tf), lambda i, j: (0, j)),
                  pl.BlockSpec((d, tf), lambda i, j: (0, j))],
        out_specs=pl.BlockSpec((tm, tf), lambda i, j: (i, j)),
        out_shape=jax.ShapeDtypeStruct((m, f), out_dtype),
        compiler_params=_cparams("parallel", "parallel"),
    )(x2d, gamma.reshape(1, d), w1, w3)


# --------------- RoPE + async in-place KV-cache writeback (aliased) ---------

def _rope_cache_kernel(q_ref, k_ref, v_ref, cos_ref, sin_ref,
                       ck_in, cv_in,
                       qo_ref, ck_out, cv_out,
                       k_scr, v_scr, sem,
                       *, n_heads, n_kv_heads, start_pos, block_s,
                       n_s_tiles, n_total, q_scale):
    del ck_in, cv_in                              # aliased with ck_out / cv_out
    b = pl.program_id(0)
    si = pl.program_id(1)
    step = b * n_s_tiles + si
    slot = step % 2

    def _wait_slot(sl):
        # reconstructing the descriptor only needs matching shapes + the semaphore
        pltpu.make_async_copy(k_scr.at[sl], ck_out.at[0, pl.ds(0, block_s)],
                              sem.at[0, sl]).wait()
        pltpu.make_async_copy(v_scr.at[sl], cv_out.at[0, pl.ds(0, block_s)],
                              sem.at[1, sl]).wait()

    # the copies launched two grid steps ago used this scratch slot: drain them first
    @pl.when(step >= 2)
    def _():
        _wait_slot(slot)

    cos = cos_ref[...]                            # (ts, Dh) f32: [c0,c0,c1,c1,...]
    sin = sin_ref[...]                            # pre-signed:   [-s0,+s0,-s1,+s1,...]

    def rope(x, reps):
        # interleaved complex rotation on the whole lane-dense block:
        #   even lane i: x[i]*c - x[i+1]*s ; odd lane i: x[i]*c + x[i-1]*s
        w = x.shape[1]
        even = lax.broadcasted_iota(jnp.int32, x.shape, 1) % 2 == 0
        partner = jnp.where(even,
                            pltpu.roll(x, shift=w - 1, axis=1),   # neighbour i+1
                            pltpu.roll(x, shift=1, axis=1))       # neighbour i-1
        cos_w = jnp.concatenate([cos] * reps, axis=-1) if reps > 1 else cos
        sin_w = jnp.concatenate([sin] * reps, axis=-1) if reps > 1 else sin
        return x * cos_w + partner * sin_w

    # K / V first so their cache DMAs overlap with the Q rotation below
    k_scr[slot] = rope(k_ref[0].astype(jnp.float32), n_kv_heads).astype(k_scr.dtype)
    v_scr[slot] = v_ref[0].astype(v_scr.dtype)
    row0 = start_pos + si * block_s               # only the new rows touch HBM
    pltpu.make_async_copy(k_scr.at[slot], ck_out.at[b, pl.ds(row0, block_s)],
                          sem.at[0, slot]).start()
    pltpu.make_async_copy(v_scr.at[slot], cv_out.at[b, pl.ds(row0, block_s)],
                          sem.at[1, slot]).start()

    # Q: rotate, fold in the 1/sqrt(head_dim) softmax scale, one lane-dense store
    q = rope(q_ref[0].astype(jnp.float32), n_heads) * q_scale
    qo_ref[0] = q.astype(qo_ref.dtype)

    # drain every outstanding copy on the final grid step
    if n_total >= 2:
        @pl.when(step == n_total - 1)
        def _():
            _wait_slot(1 - slot)

    @pl.when(step == n_total - 1)
    def _():
        _wait_slot(slot)


def rope_and_cache_update(xq, xk, xv, cos_il, sin_signed, cache_k, cache_v,
                          start_pos, n_heads, n_kv_heads, head_dim):
    b, s, nq = xq.shape
    _, _, nkv = xk.shape
    ts = _pick_tile(s, 256, 16)
    n_s_tiles = s // ts
    kernel = functools.partial(
        _rope_cache_kernel, n_heads=n_heads, n_kv_heads=n_kv_heads,
        start_pos=start_pos, block_s=ts, n_s_tiles=n_s_tiles,
        n_total=b * n_s_tiles, q_scale=1.0 / math.sqrt(head_dim))
    return pl.pallas_call(
        kernel,
        grid=(b, n_s_tiles),
        in_specs=[pl.BlockSpec((1, ts, nq), lambda bi, si: (bi, si, 0)),
                  pl.BlockSpec((1, ts, nkv), lambda bi, si: (bi, si, 0)),
                  pl.BlockSpec((1, ts, nkv), lambda bi, si: (bi, si, 0)),
                  pl.BlockSpec((ts, head_dim), lambda bi, si: (si, 0)),
                  pl.BlockSpec((ts, head_dim), lambda bi, si: (si, 0)),
                  pl.BlockSpec(memory_space=pl.ANY),
                  pl.BlockSpec(memory_space=pl.ANY)],
        out_specs=(pl.BlockSpec((1, ts, nq), lambda bi, si: (bi, si, 0)),
                   pl.BlockSpec(memory_space=pl.ANY),
                   pl.BlockSpec(memory_space=pl.ANY)),
        out_shape=(jax.ShapeDtypeStruct((b, s, nq), BF16),
                   jax.ShapeDtypeStruct(cache_k.shape, cache_k.dtype),
                   jax.ShapeDtypeStruct(cache_v.shape, cache_v.dtype)),
        scratch_shapes=[pltpu.VMEM((2, ts, nkv), cache_k.dtype),
                        pltpu.VMEM((2, ts, nkv), cache_v.dtype),
                        pltpu.SemaphoreType.DMA((2, 2))],
        input_output_aliases={5: 1, 6: 2},
        # manual cross-step DMA bookkeeping assumes one core walks the grid in order
        compiler_params=_cparams("arbitrary", "arbitrary"),
    )(xq, xk, xv, cos_il, sin_signed, cache_k, cache_v)


# -------------------- GQA flash attention (online softmax) ------------------

def _flash_attn_kernel(q_ref, k_ref, v_ref, o_ref,
                       m_scr, l_scr, acc_scr, q_scr,
                       *, n_kv_heads, n_rep, head_dim, start_pos,
                       block_q, block_k):
    si = pl.program_id(1)
    ti = pl.program_id(2)
    dh = head_dim
    n_stack = n_rep * block_q

    @pl.when(ti == 0)
    def _():
        m_scr[...] = jnp.full(m_scr.shape, NEG_INF, m_scr.dtype)
        l_scr[...] = jnp.zeros_like(l_scr)
        acc_scr[...] = jnp.zeros_like(acc_scr)
        # stack the n_rep query heads of each kv-head along M once, reuse for all T-tiles
        q = q_ref[0]                                    # (ts, H*Dh) bf16, pre-scaled
        for kvh in range(n_kv_heads):
            q_scr[kvh] = jnp.concatenate(
                [q[:, (kvh * n_rep + r) * dh:(kvh * n_rep + r + 1) * dh]
                 for r in range(n_rep)], axis=0)        # (n_rep*ts, Dh)

    # causal mask for this (S-tile, T-tile); built in-kernel (VPU), shared by all heads.
    # It also hides the padded cache rows past start_pos + seqlen.
    row = lax.broadcasted_iota(jnp.int32, (n_stack, block_k), 0) % block_q
    col = lax.broadcasted_iota(jnp.int32, (n_stack, block_k), 1)
    visible = (ti * block_k + col) <= (start_pos + si * block_q + row)

    k_blk = k_ref[0]                                    # (tt, Hkv*Dh) bf16
    v_blk = v_ref[0]

    for kvh in range(n_kv_heads):
        kh = k_blk[:, kvh * dh:(kvh + 1) * dh]          # K/V sliced once per kv-head,
        vh = v_blk[:, kvh * dh:(kvh + 1) * dh]          # shared by all n_rep q heads
        sc = lax.dot_general(q_scr[kvh], kh, (((1,), (1,)), ((), ())),
                             preferred_element_type=jnp.float32)  # (n_rep*ts, tt)
        sc = jnp.where(visible, sc, NEG_INF)
        m_prev = m_scr[kvh]
        m_new = jnp.maximum(m_prev, jnp.max(sc, axis=-1, keepdims=True))
        alpha = jnp.exp(m_prev - m_new)
        p = jnp.exp(sc - m_new)
        m_scr[kvh] = m_new
        l_scr[kvh] = alpha * l_scr[kvh] + jnp.sum(p, axis=-1, keepdims=True)
        acc_scr[kvh] = alpha * acc_scr[kvh] + jnp.dot(
            p.astype(BF16), vh, preferred_element_type=jnp.float32)

    @pl.when(ti == pl.num_programs(2) - 1)
    def _():
        for kvh in range(n_kv_heads):
            o = acc_scr[kvh] * pl.reciprocal(l_scr[kvh], approx=True)
            o = o.reshape(n_rep, block_q, dh)
            o = jnp.concatenate([o[r] for r in range(n_rep)], axis=-1)  # (ts, n_rep*Dh)
            o_ref[0, :, kvh * n_rep * dh:(kvh + 1) * n_rep * dh] = o.astype(o_ref.dtype)


def flash_mha(q, cache_k, cache_v, start_pos, n_kv_heads, n_rep, head_dim):
    # q: (B, S, H*Dh) bf16 (already scaled by 1/sqrt(Dh)); caches: (MAX_B, MAX_SEQ, Hkv*Dh) bf16.
    b, s, nq = q.shape
    _, max_seq, nkv = cache_k.shape
    ts = _pick_tile(s, min(256, max(16, 512 // max(n_rep, 1))), 16)
    tt = _pick_tile(max_seq, 512, 8)
    num_t = pl.cdiv(start_pos + s, tt)      # keys past start_pos+s are masked in-kernel
    kernel = functools.partial(
        _flash_attn_kernel, n_kv_heads=n_kv_heads, n_rep=n_rep,
        head_dim=head_dim, start_pos=start_pos, block_q=ts, block_k=tt)
    return pl.pallas_call(
        kernel,
        grid=(b, s // ts, num_t),
        in_specs=[pl.BlockSpec((1, ts, nq), lambda bi, si, ti: (bi, si, 0)),
                  pl.BlockSpec((1, tt, nkv), lambda bi, si, ti: (bi, ti, 0)),
                  pl.BlockSpec((1, tt, nkv), lambda bi, si, ti: (bi, ti, 0))],
        out_specs=pl.BlockSpec((1, ts, nq), lambda bi, si, ti: (bi, si, 0)),
        out_shape=jax.ShapeDtypeStruct((b, s, nq), BF16),
        scratch_shapes=[
            pltpu.VMEM((n_kv_heads, n_rep * ts, 1), jnp.float32),          # running max
            pltpu.VMEM((n_kv_heads, n_rep * ts, 1), jnp.float32),          # running denom
            pltpu.VMEM((n_kv_heads, n_rep * ts, head_dim), jnp.float32),   # accumulator
            pltpu.VMEM((n_kv_heads, n_rep * ts, head_dim), BF16)],         # stacked q
        compiler_params=_cparams("parallel", "parallel", "arbitrary"),
    )(q, cache_k, cache_v)


# ----------------------------- TransformerBlock -----------------------------

def transformer_block_forward(params, x, start_pos, freqs_cos, freqs_sin,
                              cache_k, cache_v):
    b, s, d = x.shape
    n_heads = params["n_heads"]
    n_kv = params["n_kv_heads"]
    dh = d // n_heads
    n_rep = n_heads // n_kv
    eps = params["norm_eps"]
    m = b * s
    x2d = x.reshape(m, d)

    # fused attention_norm + QKV projection (single pass over x, bf16 MXU, f32 acc)
    qkv = rmsnorm_matmul(x2d, params["attention_norm"], params["wqkv"], eps)
    nq = n_heads * dh
    nkv = n_kv * dh
    xq = qkv[:, :nq].reshape(b, s, nq)
    xk = qkv[:, nq:nq + nkv].reshape(b, s, nkv)
    xv = qkv[:, nq + nkv:].reshape(b, s, nkv)

    # interleaved cos / signed sin at head_dim width; widened to H*Dh lanes in-kernel
    cos_il = jnp.repeat(freqs_cos, 2, axis=-1)                       # [c0,c0,c1,c1,...]
    sign = jnp.tile(jnp.array([-1.0, 1.0], jnp.float32), dh // 2)
    sin_signed = jnp.repeat(freqs_sin, 2, axis=-1) * sign[None, :]   # [-s0,+s0,-s1,+s1,...]

    # RoPE (+ fold in 1/sqrt(Dh)) and async in-place KV-cache update (bf16 cache)
    q_roped, cache_k, cache_v = rope_and_cache_update(
        xq, xk, xv, cos_il, sin_signed, cache_k, cache_v, start_pos,
        n_heads, n_kv, dh)

    # GQA flash attention over the T-tiled bf16 cache (causal mask built in-kernel)
    attn = flash_mha(q_roped, cache_k, cache_v, start_pos, n_kv, n_rep, dh)

    # output projection with the residual add fused into the epilogue
    h_res = matmul_residual(attn.reshape(m, nq), params["wo"], x2d)

    # fused ffn_norm + SwiGLU, then K-tiled w2 matmul with fused residual
    hidden = rmsnorm_swiglu(h_res, params["ffn_norm"], params["w1"], params["w3"], eps)
    out2d = matmul_residual(hidden, params["w2"], h_res)
    return out2d.reshape(b, s, d), cache_k, cache_v


# ----------------------------- pure-JAX reference ----------------------------

def _ref_rmsnorm(x, w, eps):
    var = jnp.mean(x * x, axis=-1, keepdims=True)
    return x * jax.lax.rsqrt(var + eps) * w


def _ref_rope(x, cos, sin):
    b, s, h, dh = x.shape
    xr = x[..., 0::2]
    xi = x[..., 1::2]
    c = cos[None, :, None, :]
    sn = sin[None, :, None, :]
    out_r = xr * c - xi * sn
    out_i = xi * c + xr * sn
    return jnp.stack([out_r, out_i], axis=-1).reshape(b, s, h, dh)


def reference_forward(params, x, start_pos, cos, sin, mask, cache_k, cache_v):
    b, s, d = x.shape
    h = params["n_heads"]
    hkv = params["n_kv_heads"]
    dh = d // h
    n_rep = h // hkv
    eps = params["norm_eps"]
    f32 = lambda w: w.astype(jnp.float32)

    hn = _ref_rmsnorm(x, params["attention_norm"], eps)
    xq = (hn.reshape(b * s, d) @ f32(params["wq"])).reshape(b, s, h, dh)
    xk = (hn.reshape(b * s, d) @ f32(params["wk"])).reshape(b, s, hkv, dh)
    xv = (hn.reshape(b * s, d) @ f32(params["wv"])).reshape(b, s, hkv, dh)
    xq = _ref_rope(xq, cos, sin)
    xk = _ref_rope(xk, cos, sin)

    cache_k = cache_k.at[:b, start_pos:start_pos + s].set(
        xk.reshape(b, s, hkv * dh).astype(cache_k.dtype))
    cache_v = cache_v.at[:b, start_pos:start_pos + s].set(
        xv.reshape(b, s, hkv * dh).astype(cache_v.dtype))
    t = start_pos + s
    keys = cache_k[:b, :t].reshape(b, t, hkv, dh).astype(jnp.float32)
    values = cache_v[:b, :t].reshape(b, t, hkv, dh).astype(jnp.float32)
    keys = jnp.repeat(keys, n_rep, axis=2)
    values = jnp.repeat(values, n_rep, axis=2)

    q = jnp.transpose(xq, (0, 2, 1, 3))
    k = jnp.transpose(keys, (0, 2, 1, 3))
    v = jnp.transpose(values, (0, 2, 1, 3))
    scores = jnp.einsum("bhsd,bhtd->bhst", q, k) / math.sqrt(dh) + mask
    p = jax.nn.softmax(scores, axis=-1)
    o = jnp.einsum("bhst,bhtd->bhsd", p, v)
    o = jnp.transpose(o, (0, 2, 1, 3)).reshape(b * s, h * dh)
    attn_out = (o @ f32(params["wo"])).reshape(b, s, d)

    h_res = x + attn_out
    hn2 = _ref_rmsnorm(h_res, params["ffn_norm"], eps)
    g = hn2.reshape(b * s, d) @ f32(params["w1"])
    u = hn2.reshape(b * s, d) @ f32(params["w3"])
    ffn = ((jax.nn.silu(g) * u) @ f32(params["w2"])).reshape(b, s, d)
    return h_res + ffn, cache_k, cache_v


# ---------------------------------- main -------------------------------------

if __name__ == "__main__":
    B, S, DIM = 2, 8, 64
    N_HEADS, N_KV_HEADS = 4, 2
    HEAD_DIM = DIM // N_HEADS
    MULTIPLE_OF = 32
    MAX_BATCH, MAX_SEQ = 2, 16
    NORM_EPS = 1e-6
    START_POS = 0
    ROPE_THETA = 500000.0

    inter = int(2 * (4 * DIM) / 3)
    FFN_DIM = MULTIPLE_OF * ((inter + MULTIPLE_OF - 1) // MULTIPLE_OF)   # 192

    key = jax.random.PRNGKey(0)
    ks = jax.random.split(key, 12)

    def init_w(k, fan_in, fan_out):
        w = jax.random.normal(k, (fan_in, fan_out), jnp.float32) / math.sqrt(fan_in)
        return w.astype(BF16)                    # weights live in bf16 (MXU-native)

    wq = init_w(ks[0], DIM, N_HEADS * HEAD_DIM)
    wk = init_w(ks[1], DIM, N_KV_HEADS * HEAD_DIM)
    wv = init_w(ks[2], DIM, N_KV_HEADS * HEAD_DIM)

    params = {
        "n_heads": N_HEADS,
        "n_kv_heads": N_KV_HEADS,
        "norm_eps": NORM_EPS,
        "wq": wq, "wk": wk, "wv": wv,
        "wqkv": jnp.concatenate([wq, wk, wv], axis=1),
        "wo": init_w(ks[3], N_HEADS * HEAD_DIM, DIM),
        "w1": init_w(ks[4], DIM, FFN_DIM),
        "w3": init_w(ks[5], DIM, FFN_DIM),
        "w2": init_w(ks[6], FFN_DIM, DIM),
        "attention_norm": 1.0 + 0.1 * jax.random.normal(ks[7], (DIM,), jnp.float32),
        "ffn_norm": 1.0 + 0.1 * jax.random.normal(ks[8], (DIM,), jnp.float32),
    }

    x = jax.random.normal(ks[9], (B, S, DIM), jnp.float32)

    # rotary frequencies (cos/sin of m * theta_i), shape (S, HEAD_DIM // 2)
    inv_freq = 1.0 / (ROPE_THETA ** (jnp.arange(0, HEAD_DIM, 2, dtype=jnp.float32)
                                     / HEAD_DIM))
    t_pos = jnp.arange(START_POS, START_POS + S, dtype=jnp.float32)
    angles = jnp.outer(t_pos, inv_freq)
    freqs_cos = jnp.cos(angles)
    freqs_sin = jnp.sin(angles)

    # causal mask (only used by the pure-JAX reference; the kernel builds it on-chip)
    T = START_POS + S
    mask = jnp.where(
        jnp.arange(T)[None, :] <= (START_POS + jnp.arange(S))[:, None],
        0.0, -1e30).astype(jnp.float32)

    # bf16 KV caches with heads*head_dim flattened on the lane axis
    cache_k = jnp.zeros((MAX_BATCH, MAX_SEQ, N_KV_HEADS * HEAD_DIM), BF16)
    cache_v = jnp.zeros((MAX_BATCH, MAX_SEQ, N_KV_HEADS * HEAD_DIM), BF16)

    # pass fresh copies to the Pallas path: the cache update is aliased / in-place
    out, new_ck, new_cv = transformer_block_forward(
        params, x, START_POS, freqs_cos, freqs_sin,
        jnp.copy(cache_k), jnp.copy(cache_v))
    out = jax.block_until_ready(out)

    ref, ref_ck, ref_cv = reference_forward(
        params, x, START_POS, freqs_cos, freqs_sin, mask, cache_k, cache_v)
    ref = jax.block_until_ready(ref)

    assert out.shape == (B, S, DIM)
    assert bool(jnp.all(jnp.isfinite(out)))
    max_err = float(jnp.max(jnp.abs(out - ref)))
    assert bool(jnp.allclose(out, ref, atol=5e-2, rtol=5e-2)), max_err

    # also validate the in-place (async DMA) KV-cache writeback
    ck_err = float(jnp.max(jnp.abs(
        new_ck[:, :T].astype(jnp.float32) - ref_ck[:, :T].astype(jnp.float32))))
    cv_err = float(jnp.max(jnp.abs(
        new_cv[:, :T].astype(jnp.float32) - ref_cv[:, :T].astype(jnp.float32))))
    assert ck_err < 5e-2 and cv_err < 5e-2, (ck_err, cv_err)

    print("KERNEL_OK")
</pallas_src>

<mosaic_0001>
module attributes {stable_mosaic.version = 11 : i64} {
  func.func @_rmsnorm_matmul_kernel(%arg0: i32, %arg1: i32, %arg2: memref<16x64xf32, #tpu.memory_space<vmem>>, %arg3: memref<1x64xf32, #tpu.memory_space<vmem>>, %arg4: memref<64x128xbf16, #tpu.memory_space<vmem>>, %arg5: memref<16x128xbf16, #tpu.memory_space<vmem>>) attributes {dimension_semantics = [#tpu.dimension_semantics<parallel>, #tpu.dimension_semantics<parallel>], iteration_bounds = array<i64: 1, 1>, scalar_prefetch = 0 : i64, scratch_operands = 0 : i64, tpu.core_type = #tpu.core_type<tc>, window_params = [{transform_indices = @transform_0, window_bounds = array<i64: 16, 64>}, {pipeline_mode = #tpu.pipeline_mode<synchronous>, transform_indices = @transform_1, window_bounds = array<i64: 1, 64>}, {transform_indices = @transform_2, window_bounds = array<i64: 64, 128>}, {transform_indices = @transform_3, window_bounds = array<i64: 16, 128>}]} {
    %c0 = arith.constant 0 : index
    %c0_0 = arith.constant 0 : index
    %0 = vector.load %arg2[%c0, %c0_0] : memref<16x64xf32, #tpu.memory_space<vmem>>, vector<16x64xf32>
    %1 = arith.mulf %0, %0 : vector<16x64xf32>
    %cst = arith.constant dense<0.000000e+00> : vector<16xf32>
    %2 = vector.multi_reduction <add>, %1, %cst [1] : vector<16x64xf32> to vector<16xf32>
    %3 = vector.shape_cast %2 : vector<16xf32> to vector<16x1xf32>
    %cst_1 = arith.constant 6.400000e+01 : f32
    %4 = vector.broadcast %cst_1 : f32 to vector<16x1xf32>
    %5 = arith.divf %3, %4 : vector<16x1xf32>
    %cst_2 = arith.constant 9.99999997E-7 : f32
    %6 = vector.broadcast %cst_2 : f32 to vector<16x1xf32>
    %7 = arith.addf %5, %6 : vector<16x1xf32>
    %8 = math.rsqrt %7 : vector<16x1xf32>
    %9 = vector.broadcast %8 : vector<16x1xf32> to vector<16x64xf32>
    %10 = arith.mulf %0, %9 : vector<16x64xf32>
    %c0_3 = arith.constant 0 : index
    %c0_4 = arith.constant 0 : index
    %11 = vector.load %arg3[%c0_3, %c0_4] : memref<1x64xf32, #tpu.memory_space<vmem>>, vector<1x64xf32>
    %12 = vector.broadcast %11 : vector<1x64xf32> to vector<16x64xf32>
    %13 = arith.mulf %10, %12 : vector<16x64xf32>
    %14 = arith.truncf %13 : vector<16x64xf32> to vector<16x64xbf16>
    %c0_5 = arith.constant 0 : index
    %c0_6 = arith.constant 0 : index
    %15 = vector.load %arg4[%c0_5, %c0_6] : memref<64x128xbf16, #tpu.memory_space<vmem>>, vector<64x128xbf16>
    %cst_7 = arith.constant dense<0.000000e+00> : vector<16x128xf32>
    %16 = tpu.matmul %14, %15, %cst_7 {dimension_numbers = #tpu.dot_dimension_numbers<[1], [0], [0], [1], [0, 0, 1, 1], [], []>} : vector<16x64xbf16>, vector<64x128xbf16>, vector<16x128xf32> -> vector<16x128xf32>
    %17 = arith.truncf %16 : vector<16x128xf32> to vector<16x128xbf16>
    %c0_8 = arith.constant 0 : index
    %c0_9 = arith.constant 0 : index
    %18 = vector.load %arg5[%c0_8, %c0_9] : memref<16x128xbf16, #tpu.memory_space<vmem>>, vector<16x128xbf16>
    tpu.vector_store %arg5[%c0_8, %c0_9], %17 {strides = array<i32>} : memref<16x128xbf16, #tpu.memory_space<vmem>>, vector<16x128xbf16>,
    return
  }
  func.func @transform_0(%arg0: i32, %arg1: i32) -> (i32, i32) {
    %c0_i32 = arith.constant 0 : i32
    %c0_i32_0 = arith.constant 0 : i32
    return %arg0, %c0_i32 : i32, i32
  }
  func.func @transform_1(%arg0: i32, %arg1: i32) -> (i32, i32) {
    %c0_i32 = arith.constant 0 : i32
    %c0_i32_0 = arith.constant 0 : i32
    %c0_i32_1 = arith.constant 0 : i32
    return %c0_i32, %c0_i32_0 : i32, i32
  }
  func.func @transform_2(%arg0: i32, %arg1: i32) -> (i32, i32) {
    %c0_i32 = arith.constant 0 : i32
    %c0_i32_0 = arith.constant 0 : i32
    return %c0_i32, %arg1 : i32, i32
  }
  func.func @transform_3(%arg0: i32, %arg1: i32) -> (i32, i32) {
    %c0_i32 = arith.constant 0 : i32
    return %arg0, %arg1 : i32, i32
  }
}

</mosaic_0001>

<llo_original>
// kernel: tpu_custom_call.1
$region0: #{tpu_custom_call.1}
  #allocation0 [shape = 'u32[]', space=smem, size = 0x4, offset = 0x4, fixed_abs, tag = 'smem constant byte address 0x4 - core index']
  #allocation1 [shape = 'u32[144,128]{1,0:T(1,128)}', space=vmem, size = 0x12000, scoped, tag = 'internal scratch']
  %s0 = inlined_call_operand.hbm [shape: f32[16,64], index: 0, kind: input, shape index: {}]
  %s1 = inlined_call_operand.hbm [shape: f32[1,64], index: 1, kind: input, shape index: {}]
  %s2 = inlined_call_operand.hbm [shape: bf16[64,128], index: 2, kind: input, shape index: {}]
  %s3 = inlined_call_operand.hbm [shape: bf16[16,128], index: 3, kind: output, shape index: {}]
  %s4 = sld [smem:[#allocation0]]
  $region34: #{tpu_custom_call.1} parent=0
    _
  %s6 = ssub.s32 1, %s4
  %s7 = scalar_select 0, %s6, %s4
  $region1: #{tpu_custom_call.1} parent=0
    #allocation2 [shape = 'u8[8192]{0}', space=vmem, size = 0x2000, scoped, tag = 'input window, operand 0, single buffered']
    #allocation3 [shape = 's32[1]{0}', space=sflag, size = 0x4, scoped, tag = 'scoped memory for tpu_custom_call.1']
    #allocation4 [shape = 's32[1]{0}', space=sflag, size = 0x4, scoped, tag = 'scoped memory for tpu_custom_call.1']
    #allocation5 [shape = 'u8[512]{0}', space=vmem, size = 0x400, scoped, tag = 'input window, operand 1, single buffered']
    #allocation6 [shape = 's32[1]{0}', space=sflag, size = 0x4, scoped, tag = 'scoped memory for tpu_custom_call.1']
    #allocation7 [shape = 'u8[16384]{0}', space=vmem, size = 0x4000, scoped, tag = 'input window, operand 2, single buffered']
    #allocation8 [shape = 'u8[4096]{0}', space=vmem, size = 0x1000, scoped, tag = 'output window, operand 0, single buffered']
    %8 = vsyncpa [#allocation3], 0
    %9 = vsyncpa [#allocation6], 0
    %10 = vsyncpa [#allocation4], 0
    // Predicated region
    $region2: #{tpu_custom_call.1} parent=1 // pred_check
      _
    $region3: #{tpu_custom_call.1} parent=1 // pred_check_branch
      %12 = sbr.rel (0) target = $region5
    $region4: #{tpu_custom_call.1} parent=1 // pred_region
      %s14 = ssub.s32 256, 256
      %15 = vsyncadd [#allocation3], %s14
      %s16 = sshll.u32 [#allocation2], 4
      %s17 = int_to_ptr.vmem [resolvable:$true] %s16
      %22 = dma.hbm_to_vmem [thread:$0]  %s0, 256, %s17, [#allocation3], 128, 128, 8
    $region5: #{tpu_custom_call.1} parent=1 // pred_fallthru
      _
    // Predicated region
    $region6: #{tpu_custom_call.1} parent=1 // pred_check
      _
    $region7: #{tpu_custom_call.1} parent=1 // pred_check_branch
      %24 = sbr.rel (0) target = $region9
    $region8: #{tpu_custom_call.1} parent=1 // pred_region
      %s26 = ssub.s32 16, 16
      %27 = vsyncadd [#allocation6], %s26
      %s29 = sshll.u32 [#allocation5], 4
      %s30 = int_to_ptr.vmem [resolvable:$true] %s29
      %32 = dma.hbm_to_vmem [thread:$0]  %s1, 16, %s30, [#allocation6]
    $region9: #{tpu_custom_call.1} parent=1 // pred_fallthru
      _
    // Predicated region
    $region10: #{tpu_custom_call.1} parent=1 // pred_check
      _
    $region11: #{tpu_custom_call.1} parent=1 // pred_check_branch
      %34 = sbr.rel (0) target = $region13
    $region12: #{tpu_custom_call.1} parent=1 // pred_region
      %s36 = ssub.s32 512, 512
      %37 = vsyncadd [#allocation6], %s36
      %s38 = sshll.u32 [#allocation7], 4
      %s39 = int_to_ptr.vmem [resolvable:$true] %s38
      %44 = dma.hbm_to_vmem [thread:$0]  %s2, 512, %s39, [#allocation6], 64, 64, 4
    $region13: #{tpu_custom_call.1} parent=1 // pred_fallthru
      _
    // Predicated region
    $region14: #{tpu_custom_call.1} parent=1 // pred_check
      _
    $region15: #{tpu_custom_call.1} parent=1 // pred_check_branch
      %46 = sbr.rel (0) target = $region17
    $region16: #{tpu_custom_call.1} parent=1 // pred_region
      %47 = dma.done [#allocation3], 256
    $region17: #{tpu_custom_call.1} parent=1 // pred_fallthru
      _
    // Predicated region
    $region18: #{tpu_custom_call.1} parent=1 // pred_check
      _
    $region19: #{tpu_custom_call.1} parent=1 // pred_check_branch
      %49 = sbr.rel (0) target = $region21
    $region20: #{tpu_custom_call.1} parent=1 // pred_region
      %50 = dma.done [#allocation6], 16
    $region21: #{tpu_custom_call.1} parent=1 // pred_fallthru
      _
    // Predicated region
    $region22: #{tpu_custom_call.1} parent=1 // pred_check
      _
    $region23: #{tpu_custom_call.1} parent=1 // pred_check_branch
      %52 = sbr.rel (0) target = $region25
    $region24: #{tpu_custom_call.1} parent=1 // pred_region
      %53 = dma.done [#allocation6], 512
    $region25: #{tpu_custom_call.1} parent=1 // pred_fallthru
      _
    %v55 = vld [vmem:[#allocation2] sm:$0xff]
    %v56 = vld [vmem:[#allocation2 + $0x8] sm:$0xff]
    %v57 = vmul.f32 %v55, %v55
    %v58 = vmul.f32 %v56, %v56
    %vm59 = vcmask 523264
    %v60 = vsel %vm59, %v57, 0.0
    %61 = vadd.xlane.f32.xlu0 %v60
    %v62 = vpop.xlane.xlu0 %61
    %v63 = vsel %vm59, %v58, 0.0
    %64 = vadd.xlane.f32.xlu0 %v63
    %v65 = vpop.xlane.xlu0 %64
    %v66 = vrcp.pop 64.0
    %v67 = vmul.f32 %v62, %v66
    %v68 = vmul.f32 %v65, %v66
    %v69 = vadd.f32 %v67, 1e-06
    %v70 = vadd.f32 %v68, 1e-06
    %v71 = vrsqrt.pop %v69
    %v72 = vrsqrt.pop %v70
    %v73 = vmul.f32 %v55, %v71
    %v74 = vmul.f32 %v56, %v72
    %v75 = vld [vmem:[#allocation5] sm:$0x1]
    %v77 = vlaneseq
    %v78 = vshrl.u32 %v77, 7
    %v79 = vsub.s32 0, %v78
    %v80 = vrot.slane %v75, %v79
    %v82 = vmul.f32 %v73, %v80
    %v83 = vmul.f32 %v74, %v80
    %v84 = vpack.c.bf16 %v83, %v82
    %v85 = vld [vmem:[#allocation7] sm:$0xf]
    %v86 = vld [vmem:[#allocation7 + $0x4] sm:$0xf]
    %v87 = vld [vmem:[#allocation7 + $0x8] sm:$0xf]
    %v88 = vld [vmem:[#allocation7 + $0xc] sm:$0xf]
    %v89 = vld [vmem:[#allocation7 + $0x10] sm:$0xf]
    %v90 = vld [vmem:[#allocation7 + $0x14] sm:$0xf]
    %v91 = vld [vmem:[#allocation7 + $0x18] sm:$0xf]
    %v92 = vld [vmem:[#allocation7 + $0x1c] sm:$0xf]
    %v101 = vunpack.c.l.b16 %v85
    %v102 = vunpack.c.l.b16 %v86
    %v103 = vunpack.c.l.b16 %v87
    %v104 = vunpack.c.l.b16 %v88
    %v105 = vunpack.c.l.b16 %v89
    %v106 = vunpack.c.l.b16 %v90
    %v107 = vunpack.c.l.b16 %v91
    %v108 = vunpack.c.l.b16 %v92
    %v109 = vpack.c.b16 %v102, %v101
    %v110 = vpack.c.b16 %v104, %v103
    %v111 = vpack.c.b16 %v106, %v105
    %v112 = vpack.c.b16 %v108, %v107
    %v118 = vsel %vm59, %v84, 0
    %120 = vmatprep.subr.bf16.mxu0 0
    %121 = vmatpush1.bf16.msra.mxu0 %v109
    %122 = vmatprep.subr.bf16.mxu0 0
    %123 = vmatpush1.bf16.msra.mxu0 %v110
    %124 = vmatprep.subr.bf16.mxu0 0
    %125 = vmatpush1.bf16.msra.mxu0 %v111
    %126 = vmatprep.subr.bf16.mxu0 0
    %127 = vmatpush1.bf16.msra.mxu0 %v112
    %128 = vmatprep.subr.bf16.mxu0 0
    %129 = vmatpush1.bf16.msra.mxu0 0
    %130 = vmatprep.subr.bf16.mxu0 0
    %131 = vmatpush1.bf16.msra.mxu0 0
    %132 = vmatprep.subr.bf16.mxu0 0
    %133 = vmatpush1.bf16.msra.mxu0 0
    %134 = vmatprep.subr.bf16.mxu0 0
    %135 = vmatpush1.bf16.msra.mxu0 0
    %136 = vmatprep.subr.bf16.mxu0 0
    %137 = vmatpush1.bf16.msra.mxu0 0
    %138 = vmatprep.subr.bf16.mxu0 0
    %139 = vmatpush1.bf16.msra.mxu0 0
    %140 = vmatprep.subr.bf16.mxu0 0
    %141 = vmatpush1.bf16.msra.mxu0 0
    %142 = vmatprep.subr.bf16.mxu0 0
    %143 = vmatpush1.bf16.msra.mxu0 0
    %144 = vmatprep.subr.bf16.mxu0 0
    %145 = vmatpush1.bf16.msra.mxu0 0
    %146 = vmatprep.subr.bf16.mxu0 0
    %147 = vmatpush1.bf16.msra.mxu0 0
    %148 = vmatprep.subr.bf16.mxu0 0
    %149 = vmatpush1.bf16.msra.mxu0 0
    %150 = vmatprep.subr.bf16.mxu0 0
    %151 = vmatpush1.bf16.msra.mxu0 0
    %152 = vmatprep.mubr.bf16.mxu0 0
    %153 = vmatmul.mubr.bf16.gmra.mrb[0].mxu0 %v118
    %v154 = vpop.f32.mrb[0].mxu0
    %v155 = vadd.f32 0.0, %v154
    %v156 = vpop.f32.mrb[0].mxu0
    %v157 = vpop.f32.mrb[0].mxu0
    %v158 = vadd.f32 0.0, %v157
    %v159 = vpop.f32.mrb[0].mxu0
    %160 = vdwg.mxu0
    %v161 = vpack.c.bf16 %v158, %v155
    %v163 = vunpack.c.l.b16 %v161
    %v164 = vunpack.c.h.b16 %v161
    %v165 = vpack.c.b16 %v163, %v163
    %v166 = vpack.c.b16 %v164, %v164
    %169 = vst [vmem:[#allocation8] sm:$0xf] %v165
    %170 = vst [vmem:[#allocation8 + $0x4] sm:$0xf] %v166
    // Predicated region
    $region26: #{tpu_custom_call.1} parent=1 // pred_check
      _
    $region27: #{tpu_custom_call.1} parent=1 // pred_check_branch
      %172 = sbr.rel (0) target = $region29
    $region28: #{tpu_custom_call.1} parent=1 // pred_region
      %s174 = ssub.s32 128, 128
      %175 = vsyncadd [#allocation4], %s174
      %s176 = sshll.u32 [#allocation8], 4
      %s177 = int_to_ptr.vmem [resolvable:$true] %s176
      %182 = dma.vmem_to_hbm [thread:$0]  %s177, 128, %s3, [#allocation4], 64, 64, 4
    $region29: #{tpu_custom_call.1} parent=1 // pred_fallthru
      _
    // Predicated region
    $region30: #{tpu_custom_call.1} parent=1 // pred_check
      _
    $region31: #{tpu_custom_call.1} parent=1 // pred_check_branch
      %184 = sbr.rel (0) target = $region33
    $region32: #{tpu_custom_call.1} parent=1 // pred_region
      %185 = dma.done [#allocation4], 128
    $region33: #{tpu_custom_call.1} parent=1 // pred_fallthru
      _
    %186 = vsyncpa [#allocation3], 1
    %187 = vsyncpa [#allocation6], 1
    %188 = vsyncpa [#allocation4], 1

</llo_original>
